<compile_context>
chip_gen: v5e
topology: v5e:2x2
jax: 0.10.0
libtpu: 0.0.40
codegen_flags: <defaults>
</compile_context>

<pallas_src>
import functools

import jax
import jax.numpy as jnp
from jax.experimental import pallas as pl
from jax.experimental.pallas import tpu as pltpu

_LANE = 128


def _round_up(n, m):
    return ((n + m - 1) // m) * m


def _silu(x):
    return x * jax.nn.sigmoid(x)


def gaussian_encoder_kernel(
    x_ref,
    w0_ref, b0_ref,
    w1_ref, b1_ref,
    w2_ref, b2_ref,
    mu_ref, sd_ref,
    *, min_logstd, max_logstd, out_pad,
):
    x = x_ref[...]

    # Hidden layer 0 (Linear + SiLU) — MXU matmul, f32 accumulation.
    h = jnp.dot(x, w0_ref[...], preferred_element_type=jnp.float32) + b0_ref[...]
    h = _silu(h)                                  # f32 epilogue (EUP sigmoid)
    h = h.astype(w1_ref.dtype)                    # keep bf16 MXU path if enabled

    # Hidden layer 1 (Linear + SiLU).
    h = jnp.dot(h, w1_ref[...], preferred_element_type=jnp.float32) + b1_ref[...]
    h = _silu(h)
    h = h.astype(w2_ref.dtype)

    # Fused output head: columns = [mu_pad | logstd_pad] (== torch.chunk).
    o = jnp.dot(h, w2_ref[...], preferred_element_type=jnp.float32) + b2_ref[...]

    mu_ref[...] = o[:, :out_pad].astype(mu_ref.dtype)
    sd_ref[...] = jnp.exp(
        jnp.clip(o[:, out_pad:], min_logstd, max_logstd)
    ).astype(sd_ref.dtype)


def gaussian_encoder_forward(x, params, *, block_b=128,
                             min_logstd=-20.0, max_logstd=2.0,
                             compute_dtype=jnp.float32):
    """x: [B, input_dim] -> (mu: [B, output_dim], sd: [B, output_dim]).

    params = (w0, b0, w1, b1, w2, b2), torch layout:
      w*: [in_features, out_features], b*: [1, out_features],
      w2/b2 produce [mu | logstd] concatenated on the last axis.
    """
    w0, b0, w1, b1, w2, b2 = params
    B, in_dim = x.shape
    h0 = w0.shape[1]
    h1 = w1.shape[1]
    out_dim = w2.shape[1] // 2

    # --- lane-dense zero padding (exact: padded rows/cols contribute 0) -----
    in_p = _round_up(in_dim, _LANE)
    h0_p = _round_up(h0, _LANE)
    h1_p = _round_up(h1, _LANE)
    out_p = _round_up(out_dim, _LANE)

    pad2 = lambda a, r, c: jnp.pad(a, ((0, r - a.shape[0]), (0, c - a.shape[1])))

    w0_p = pad2(w0, in_p, h0_p).astype(compute_dtype)
    b0_p = pad2(b0, 1, h0_p).astype(jnp.float32)
    w1_p = pad2(w1, h0_p, h1_p).astype(compute_dtype)
    b1_p = pad2(b1, 1, h1_p).astype(jnp.float32)

    # Split the wide head column-wise (== torch.chunk), pad each half to a
    # full 128-lane slab, then re-fuse into a single MXU matmul.
    wmu, wls = w2[:, :out_dim], w2[:, out_dim:]
    bmu, bls = b2[:, :out_dim], b2[:, out_dim:]
    w2_p = jnp.concatenate(
        [pad2(wmu, h1_p, out_p), pad2(wls, h1_p, out_p)], axis=1
    ).astype(compute_dtype)
    b2_p = jnp.concatenate(
        [pad2(bmu, 1, out_p), pad2(bls, 1, out_p)], axis=1
    ).astype(jnp.float32)

    # --- batch tiling: pad B up; tiny batches -> single grid step -----------
    block_b = _round_up(block_b, 8)
    bb = min(block_b, _round_up(B, 8))
    B_p = _round_up(B, bb)
    x_p = pad2(x, B_p, in_p).astype(compute_dtype)

    full = lambda arr: pl.BlockSpec(arr.shape, lambda i: (0,) * arr.ndim)

    kernel = functools.partial(
        gaussian_encoder_kernel,
        min_logstd=min_logstd, max_logstd=max_logstd, out_pad=out_p,
    )

    mu_p, sd_p = pl.pallas_call(
        kernel,
        out_shape=(
            jax.ShapeDtypeStruct((B_p, out_p), jnp.float32),
            jax.ShapeDtypeStruct((B_p, out_p), jnp.float32),
        ),
        grid_spec=pltpu.PrefetchScalarGridSpec(
            num_scalar_prefetch=0,
            grid=(B_p // bb,),
            in_specs=[
                pl.BlockSpec((bb, in_p), lambda i: (i, 0)),
                full(w0_p), full(b0_p),
                full(w1_p), full(b1_p),
                full(w2_p), full(b2_p),
            ],
            out_specs=[
                pl.BlockSpec((bb, out_p), lambda i: (i, 0)),
                pl.BlockSpec((bb, out_p), lambda i: (i, 0)),
            ],
        ),
        compiler_params=pltpu.CompilerParams(
            dimension_semantics=("parallel",),
        ),
    )(x_p, w0_p, b0_p, w1_p, b1_p, w2_p, b2_p)

    return mu_p[:B, :out_dim], sd_p[:B, :out_dim]


def init_params(key, input_dim, output_dim, hidden_dims):
    """Deterministic synthetic parameters (same shapes as the torch MLP)."""
    h0, h1 = hidden_dims
    ks = jax.random.split(key, 6)
    scale = 0.1
    w0 = scale * jax.random.normal(ks[0], (input_dim, h0), jnp.float32)
    b0 = scale * jax.random.normal(ks[1], (1, h0), jnp.float32)
    w1 = scale * jax.random.normal(ks[2], (h0, h1), jnp.float32)
    b1 = scale * jax.random.normal(ks[3], (1, h1), jnp.float32)
    w2 = scale * jax.random.normal(ks[4], (h1, 2 * output_dim), jnp.float32)
    b2 = scale * jax.random.normal(ks[5], (1, 2 * output_dim), jnp.float32)
    return (w0, b0, w1, b1, w2, b2)


def reference_forward(x, params, min_logstd=-20.0, max_logstd=2.0):
    w0, b0, w1, b1, w2, b2 = params
    h = jax.nn.silu(x @ w0 + b0)
    h = jax.nn.silu(h @ w1 + b1)
    o = h @ w2 + b2
    out_dim = o.shape[-1] // 2
    mu, ls = o[:, :out_dim], o[:, out_dim:]
    sd = jnp.exp(jnp.clip(ls, min_logstd, max_logstd))
    return mu, sd


if __name__ == "__main__":
    key = jax.random.PRNGKey(0)
    k_x, k_p = jax.random.split(key)

    batch = 8
    input_dim = 32
    output_dim = 16
    hidden_dims = (64, 64)
    # Dropout defaults to 0.0 in the module (identity) — omitted.
    # TODO(synk): torch_dist.Normal rsample (get_dist/sample) is not part of forward().

    x = jax.random.normal(k_x, (batch, input_dim), jnp.float32)
    params = init_params(k_p, input_dim, output_dim, hidden_dims)

    # f32 path (exact vs reference).
    mu, sd = gaussian_encoder_forward(x, params)
    mu, sd = jax.block_until_ready((mu, sd))

    mu_ref, sd_ref = reference_forward(x, params)
    assert mu.shape == (batch, output_dim) and sd.shape == (batch, output_dim)
    assert jnp.allclose(mu, mu_ref, atol=1e-5, rtol=1e-5)
    assert jnp.allclose(sd, sd_ref, atol=1e-5, rtol=1e-5)
    assert bool(jnp.all(sd > 0))

    # bf16 weight/activation path (v6e/v7x recommendation), f32 accumulation.
    mu_bf, sd_bf = gaussian_encoder_forward(x, params, compute_dtype=jnp.bfloat16)
    mu_bf, sd_bf = jax.block_until_ready((mu_bf, sd_bf))
    assert jnp.allclose(mu_bf, mu_ref, atol=5e-2, rtol=5e-2)
    assert jnp.allclose(sd_bf, sd_ref, atol=5e-2, rtol=5e-2)

    print("KERNEL_OK")
</pallas_src>

<mosaic_0001>
module attributes {stable_mosaic.version = 11 : i64} {
  func.func @gaussian_encoder_kernel(%arg0: i32, %arg1: memref<8x128xf32, #tpu.memory_space<vmem>>, %arg2: memref<128x128xf32, #tpu.memory_space<vmem>>, %arg3: memref<1x128xf32, #tpu.memory_space<vmem>>, %arg4: memref<128x128xf32, #tpu.memory_space<vmem>>, %arg5: memref<1x128xf32, #tpu.memory_space<vmem>>, %arg6: memref<128x256xf32, #tpu.memory_space<vmem>>, %arg7: memref<1x256xf32, #tpu.memory_space<vmem>>, %arg8: memref<8x128xf32, #tpu.memory_space<vmem>>, %arg9: memref<8x128xf32, #tpu.memory_space<vmem>>) attributes {dimension_semantics = [#tpu.dimension_semantics<parallel>], iteration_bounds = array<i64: 1>, scalar_prefetch = 0 : i64, scratch_operands = 0 : i64, tpu.core_type = #tpu.core_type<tc>, window_params = [{transform_indices = @transform_0, window_bounds = array<i64: 8, 128>}, {pipeline_mode = #tpu.pipeline_mode<synchronous>, transform_indices = @transform_1, window_bounds = array<i64: 128, 128>}, {pipeline_mode = #tpu.pipeline_mode<synchronous>, transform_indices = @transform_2, window_bounds = array<i64: 1, 128>}, {pipeline_mode = #tpu.pipeline_mode<synchronous>, transform_indices = @transform_3, window_bounds = array<i64: 128, 128>}, {pipeline_mode = #tpu.pipeline_mode<synchronous>, transform_indices = @transform_4, window_bounds = array<i64: 1, 128>}, {pipeline_mode = #tpu.pipeline_mode<synchronous>, transform_indices = @transform_5, window_bounds = array<i64: 128, 256>}, {pipeline_mode = #tpu.pipeline_mode<synchronous>, transform_indices = @transform_6, window_bounds = array<i64: 1, 256>}, {transform_indices = @transform_7, window_bounds = array<i64: 8, 128>}, {transform_indices = @transform_8, window_bounds = array<i64: 8, 128>}]} {
    %c0 = arith.constant 0 : index
    %c0_0 = arith.constant 0 : index
    %0 = vector.load %arg1[%c0, %c0_0] : memref<8x128xf32, #tpu.memory_space<vmem>>, vector<8x128xf32>
    %c0_1 = arith.constant 0 : index
    %c0_2 = arith.constant 0 : index
    %1 = vector.load %arg2[%c0_1, %c0_2] : memref<128x128xf32, #tpu.memory_space<vmem>>, vector<128x128xf32>
    %cst = arith.constant dense<0.000000e+00> : vector<8x128xf32>
    %2 = tpu.matmul %0, %1, %cst {dimension_numbers = #tpu.dot_dimension_numbers<[1], [0], [0], [1], [0, 0, 1, 1], [], []>} : vector<8x128xf32>, vector<128x128xf32>, vector<8x128xf32> -> vector<8x128xf32>
    %c0_3 = arith.constant 0 : index
    %c0_4 = arith.constant 0 : index
    %3 = vector.load %arg3[%c0_3, %c0_4] : memref<1x128xf32, #tpu.memory_space<vmem>>, vector<1x128xf32>
    %4 = vector.broadcast %3 : vector<1x128xf32> to vector<8x128xf32>
    %5 = arith.addf %2, %4 : vector<8x128xf32>
    %6 = arith.negf %5 : vector<8x128xf32>
    %7 = math.exp %6 : vector<8x128xf32>
    %cst_5 = arith.constant 1.000000e+00 : f32
    %8 = vector.broadcast %cst_5 : f32 to vector<8x128xf32>
    %9 = arith.addf %8, %7 : vector<8x128xf32>
    %10 = arith.divf %8, %9 : vector<8x128xf32>
    %11 = arith.mulf %5, %10 : vector<8x128xf32>
    %c0_6 = arith.constant 0 : index
    %c0_7 = arith.constant 0 : index
    %12 = vector.load %arg4[%c0_6, %c0_7] : memref<128x128xf32, #tpu.memory_space<vmem>>, vector<128x128xf32>
    %cst_8 = arith.constant dense<0.000000e+00> : vector<8x128xf32>
    %13 = tpu.matmul %11, %12, %cst_8 {dimension_numbers = #tpu.dot_dimension_numbers<[1], [0], [0], [1], [0, 0, 1, 1], [], []>} : vector<8x128xf32>, vector<128x128xf32>, vector<8x128xf32> -> vector<8x128xf32>
    %c0_9 = arith.constant 0 : index
    %c0_10 = arith.constant 0 : index
    %14 = vector.load %arg5[%c0_9, %c0_10] : memref<1x128xf32, #tpu.memory_space<vmem>>, vector<1x128xf32>
    %15 = vector.broadcast %14 : vector<1x128xf32> to vector<8x128xf32>
    %16 = arith.addf %13, %15 : vector<8x128xf32>
    %17 = arith.negf %16 : vector<8x128xf32>
    %18 = math.exp %17 : vector<8x128xf32>
    %cst_11 = arith.constant 1.000000e+00 : f32
    %19 = vector.broadcast %cst_11 : f32 to vector<8x128xf32>
    %20 = arith.addf %19, %18 : vector<8x128xf32>
    %21 = arith.divf %19, %20 : vector<8x128xf32>
    %22 = arith.mulf %16, %21 : vector<8x128xf32>
    %c0_12 = arith.constant 0 : index
    %c0_13 = arith.constant 0 : index
    %23 = vector.load %arg6[%c0_12, %c0_13] : memref<128x256xf32, #tpu.memory_space<vmem>>, vector<128x256xf32>
    %cst_14 = arith.constant dense<0.000000e+00> : vector<8x256xf32>
    %24 = tpu.matmul %22, %23, %cst_14 {dimension_numbers = #tpu.dot_dimension_numbers<[1], [0], [0], [1], [0, 0, 1, 1], [], []>} : vector<8x128xf32>, vector<128x256xf32>, vector<8x256xf32> -> vector<8x256xf32>
    %c0_15 = arith.constant 0 : index
    %c0_16 = arith.constant 0 : index
    %25 = vector.load %arg7[%c0_15, %c0_16] : memref<1x256xf32, #tpu.memory_space<vmem>>, vector<1x256xf32>
    %26 = vector.broadcast %25 : vector<1x256xf32> to vector<8x256xf32>
    %27 = arith.addf %24, %26 : vector<8x256xf32>
    %28 = vector.extract_strided_slice %27 {offsets = [0, 0], sizes = [8, 128], strides = [1, 1]} : vector<8x256xf32> to vector<8x128xf32>
    %c0_17 = arith.constant 0 : index
    %c0_18 = arith.constant 0 : index
    %29 = vector.load %arg8[%c0_17, %c0_18] : memref<8x128xf32, #tpu.memory_space<vmem>>, vector<8x128xf32>
    tpu.vector_store %arg8[%c0_17, %c0_18], %28 {strides = array<i32>} : memref<8x128xf32, #tpu.memory_space<vmem>>, vector<8x128xf32>,
    %30 = vector.extract_strided_slice %27 {offsets = [0, 128], sizes = [8, 128], strides = [1, 1]} : vector<8x256xf32> to vector<8x128xf32>
    %cst_19 = arith.constant -2.000000e+01 : f32
    %cst_20 = arith.constant 2.000000e+00 : f32
    %31 = vector.broadcast %cst_19 : f32 to vector<8x128xf32>
    %32 = arith.maximumf %31, %30 : vector<8x128xf32>
    %33 = vector.broadcast %cst_20 : f32 to vector<8x128xf32>
    %34 = arith.minimumf %33, %32 : vector<8x128xf32>
    %35 = math.exp %34 : vector<8x128xf32>
    %c0_21 = arith.constant 0 : index
    %c0_22 = arith.constant 0 : index
    %36 = vector.load %arg9[%c0_21, %c0_22] : memref<8x128xf32, #tpu.memory_space<vmem>>, vector<8x128xf32>
    tpu.vector_store %arg9[%c0_21, %c0_22], %35 {strides = array<i32>} : memref<8x128xf32, #tpu.memory_space<vmem>>, vector<8x128xf32>,
    return
  }
  func.func @transform_0(%arg0: i32) -> (i32, i32) {
    %c0_i32 = arith.constant 0 : i32
    %c0_i32_0 = arith.constant 0 : i32
    return %arg0, %c0_i32 : i32, i32
  }
  func.func @transform_1(%arg0: i32) -> (i32, i32) {
    %c0_i32 = arith.constant 0 : i32
    %c0_i32_0 = arith.constant 0 : i32
    %c0_i32_1 = arith.constant 0 : i32
    return %c0_i32, %c0_i32_0 : i32, i32
  }
  func.func @transform_2(%arg0: i32) -> (i32, i32) {
    %c0_i32 = arith.constant 0 : i32
    %c0_i32_0 = arith.constant 0 : i32
    %c0_i32_1 = arith.constant 0 : i32
    return %c0_i32, %c0_i32_0 : i32, i32
  }
  func.func @transform_3(%arg0: i32) -> (i32, i32) {
    %c0_i32 = arith.constant 0 : i32
    %c0_i32_0 = arith.constant 0 : i32
    %c0_i32_1 = arith.constant 0 : i32
    return %c0_i32, %c0_i32_0 : i32, i32
  }
  func.func @transform_4(%arg0: i32) -> (i32, i32) {
    %c0_i32 = arith.constant 0 : i32
    %c0_i32_0 = arith.constant 0 : i32
    %c0_i32_1 = arith.constant 0 : i32
    return %c0_i32, %c0_i32_0 : i32, i32
  }
  func.func @transform_5(%arg0: i32) -> (i32, i32) {
    %c0_i32 = arith.constant 0 : i32
    %c0_i32_0 = arith.constant 0 : i32
    %c0_i32_1 = arith.constant 0 : i32
    return %c0_i32, %c0_i32_0 : i32, i32
  }
  func.func @transform_6(%arg0: i32) -> (i32, i32) {
    %c0_i32 = arith.constant 0 : i32
    %c0_i32_0 = arith.constant 0 : i32
    %c0_i32_1 = arith.constant 0 : i32
    return %c0_i32, %c0_i32_0 : i32, i32
  }
  func.func @transform_7(%arg0: i32) -> (i32, i32) {
    %c0_i32 = arith.constant 0 : i32
    %c0_i32_0 = arith.constant 0 : i32
    return %arg0, %c0_i32 : i32, i32
  }
  func.func @transform_8(%arg0: i32) -> (i32, i32) {
    %c0_i32 = arith.constant 0 : i32
    %c0_i32_0 = arith.constant 0 : i32
    return %arg0, %c0_i32 : i32, i32
  }
}

</mosaic_0001>

<llo_original>
// kernel: tpu_custom_call.1
$region0: #{tpu_custom_call.1}
  #allocation0 [shape = 'u32[]', space=smem, size = 0x4, offset = 0x4, fixed_abs, tag = 'smem constant byte address 0x4 - core index']
  #allocation1 [shape = 'u32[72,128]{1,0:T(1,128)}', space=vmem, size = 0x9000, scoped, tag = 'internal scratch']
  %s0 = inlined_call_operand.hbm [shape: f32[8,128], index: 0, kind: input, shape index: {}]
  %s1 = inlined_call_operand.hbm [shape: f32[128,128], index: 1, kind: input, shape index: {}]
  %s2 = inlined_call_operand.vmem [shape: f32[1,128], index: 2, kind: input, shape index: {}]
  %s3 = inlined_call_operand.hbm [shape: f32[128,128], index: 3, kind: input, shape index: {}]
  %s4 = inlined_call_operand.hbm [shape: f32[1,128], index: 4, kind: input, shape index: {}]
  %s5 = inlined_call_operand.hbm [shape: f32[128,256], index: 5, kind: input, shape index: {}]
  %s6 = inlined_call_operand.vmem [shape: f32[1,256], index: 6, kind: input, shape index: {}]
  %s7 = inlined_call_operand.hbm [shape: f32[8,128], index: 7, kind: output, shape index: {0}]
  %s8 = inlined_call_operand.hbm [shape: f32[8,128], index: 8, kind: output, shape index: {1}]
  %9 = xla_tuple %s7, %s8
  %s10 = sld [smem:[#allocation0]]
  $region66: #{tpu_custom_call.1} parent=0
    _
  %s12 = ssub.s32 1, %s10
  %s13 = scalar_select 0, %s12, %s10
  $region1: #{tpu_custom_call.1} parent=0
    #allocation2 [shape = 'u8[4096]{0}', space=vmem, size = 0x1000, scoped, tag = 'input window, operand 0, single buffered']
    #allocation3 [shape = 's32[1]{0}', space=sflag, size = 0x4, scoped, tag = 'scoped memory for tpu_custom_call.1']
    #allocation4 [shape = 's32[1]{0}', space=sflag, size = 0x4, scoped, tag = 'scoped memory for tpu_custom_call.1']
    #allocation5 [shape = 'u8[65536]{0}', space=vmem, size = 0x10000, scoped, tag = 'input window, operand 1, single buffered']
    #allocation6 [shape = 's32[1]{0}', space=sflag, size = 0x4, scoped, tag = 'scoped memory for tpu_custom_call.1']
    #allocation7 [shape = 'u8[65536]{0}', space=vmem, size = 0x10000, scoped, tag = 'input window, operand 3, single buffered']
    #allocation8 [shape = 'u8[512]{0}', space=vmem, size = 0x400, scoped, tag = 'input window, operand 4, single buffered']
    #allocation9 [shape = 's32[1]{0}', space=sflag, size = 0x4, scoped, tag = 'scoped memory for tpu_custom_call.1']
    #allocation10 [shape = 'u8[131072]{0}', space=vmem, size = 0x20000, scoped, tag = 'input window, operand 5, single buffered']
    #allocation11 [shape = 'u8[4096]{0}', space=vmem, size = 0x1000, scoped, tag = 'output window, operand 0, single buffered']
    #allocation12 [shape = 'u8[4096]{0}', space=vmem, size = 0x1000, scoped, tag = 'output window, operand 1, single buffered']
    #allocation13 [shape = 's32[1]{0}', space=sflag, size = 0x4, scoped, tag = 'scoped memory for tpu_custom_call.1']
    %14 = vsyncpa [#allocation3], 0
    %15 = vsyncpa [#allocation6], 0
    %16 = vsyncpa [#allocation9], 0
    %17 = vsyncpa [#allocation4], 0
    %18 = vsyncpa [#allocation13], 0
    // Predicated region
    $region2: #{tpu_custom_call.1} parent=1 // pred_check
      _
    $region3: #{tpu_custom_call.1} parent=1 // pred_check_branch
      %20 = sbr.rel (0) target = $region5
    $region4: #{tpu_custom_call.1} parent=1 // pred_region
      %22 = vsyncadd [#allocation3], 0
      %s24 = sshll.u32 %s0, 4
      %s25 = int_to_ptr.hbm [resolvable:$true] %s24
      %s26 = sshll.u32 [#allocation2], 4
      %s27 = int_to_ptr.vmem [resolvable:$true] %s26
      %29 = dma.hbm_to_vmem [thread:$0]  %s25, 128, %s27, [#allocation3]
    $region5: #{tpu_custom_call.1} parent=1 // pred_fallthru
      _
    // Predicated region
    $region6: #{tpu_custom_call.1} parent=1 // pred_check
      _
    $region7: #{tpu_custom_call.1} parent=1 // pred_check_branch
      %31 = sbr.rel (0) target = $region9
    $region8: #{tpu_custom_call.1} parent=1 // pred_region
      %33 = vsyncadd [#allocation6], 0
      %s34 = sshll.u32 %s1, 4
      %s35 = int_to_ptr.hbm [resolvable:$true] %s34
      %s36 = sshll.u32 [#allocation5], 4
      %s37 = int_to_ptr.vmem [resolvable:$true] %s36
      %42 = dma.hbm_to_vmem [thread:$0]  %s35, 2048, %s37, [#allocation6], 128, 128, 8
    $region9: #{tpu_custom_call.1} parent=1 // pred_fallthru
      _
    // Predicated region
    $region10: #{tpu_custom_call.1} parent=1 // pred_check
      _
    $region11: #{tpu_custom_call.1} parent=1 // pred_check_branch
      %44 = sbr.rel (0) target = $region13
    $region12: #{tpu_custom_call.1} parent=1 // pred_region
      _
    $region13: #{tpu_custom_call.1} parent=1 // pred_fallthru
      _
    // Predicated region
    $region14: #{tpu_custom_call.1} parent=1 // pred_check
      _
    $region15: #{tpu_custom_call.1} parent=1 // pred_check_branch
      %46 = sbr.rel (0) target = $region17
    $region16: #{tpu_custom_call.1} parent=1 // pred_region
      %48 = vsyncadd [#allocation6], 0
      %s49 = sshll.u32 %s3, 4
      %s50 = int_to_ptr.hbm [resolvable:$true] %s49
      %s51 = sshll.u32 [#allocation7], 4
      %s52 = int_to_ptr.vmem [resolvable:$true] %s51
      %57 = dma.hbm_to_vmem [thread:$0]  %s50, 2048, %s52, [#allocation6], 128, 128, 8
    $region17: #{tpu_custom_call.1} parent=1 // pred_fallthru
      _
    // Predicated region
    $region18: #{tpu_custom_call.1} parent=1 // pred_check
      _
    $region19: #{tpu_custom_call.1} parent=1 // pred_check_branch
      %59 = sbr.rel (0) target = $region21
    $region20: #{tpu_custom_call.1} parent=1 // pred_region
      %61 = vsyncadd [#allocation9], 0
      %s63 = sshll.u32 %s4, 4
      %s64 = int_to_ptr.hbm [resolvable:$true] %s63
      %s65 = sshll.u32 [#allocation8], 4
      %s66 = int_to_ptr.vmem [resolvable:$true] %s65
      %68 = dma.hbm_to_vmem [thread:$0]  %s64, 16, %s66, [#allocation9]
    $region21: #{tpu_custom_call.1} parent=1 // pred_fallthru
      _
    // Predicated region
    $region22: #{tpu_custom_call.1} parent=1 // pred_check
      _
    $region23: #{tpu_custom_call.1} parent=1 // pred_check_branch
      %70 = sbr.rel (0) target = $region25
    $region24: #{tpu_custom_call.1} parent=1 // pred_region
      %72 = vsyncadd [#allocation9], 0
      %s73 = sshll.u32 %s5, 4
      %s74 = int_to_ptr.hbm [resolvable:$true] %s73
      %s75 = sshll.u32 [#allocation10], 4
      %s76 = int_to_ptr.vmem [resolvable:$true] %s75
      %81 = dma.hbm_to_vmem [thread:$0]  %s74, 4096, %s76, [#allocation9], 256, 256, 16
    $region25: #{tpu_custom_call.1} parent=1 // pred_fallthru
      _
    // Predicated region
    $region26: #{tpu_custom_call.1} parent=1 // pred_check
      _
    $region27: #{tpu_custom_call.1} parent=1 // pred_check_branch
      %83 = sbr.rel (0) target = $region29
    $region28: #{tpu_custom_call.1} parent=1 // pred_region
      _
    $region29: #{tpu_custom_call.1} parent=1 // pred_fallthru
      _
    // Predicated region
    $region30: #{tpu_custom_call.1} parent=1 // pred_check
      _
    $region31: #{tpu_custom_call.1} parent=1 // pred_check_branch
      %85 = sbr.rel (0) target = $region33
    $region32: #{tpu_custom_call.1} parent=1 // pred_region
      %87 = dma.done [#allocation3], 128
    $region33: #{tpu_custom_call.1} parent=1 // pred_fallthru
      _
    // Predicated region
    $region34: #{tpu_custom_call.1} parent=1 // pred_check
      _
    $region35: #{tpu_custom_call.1} parent=1 // pred_check_branch
      %89 = sbr.rel (0) target = $region37
    $region36: #{tpu_custom_call.1} parent=1 // pred_region
      %91 = dma.done [#allocation6], 2048
    $region37: #{tpu_custom_call.1} parent=1 // pred_fallthru
      _
    // Predicated region
    $region38: #{tpu_custom_call.1} parent=1 // pred_check
      _
    $region39: #{tpu_custom_call.1} parent=1 // pred_check_branch
      %93 = sbr.rel (0) target = $region41
    $region40: #{tpu_custom_call.1} parent=1 // pred_region
      %95 = dma.done [#allocation6], 2048
    $region41: #{tpu_custom_call.1} parent=1 // pred_fallthru
      _
    // Predicated region
    $region42: #{tpu_custom_call.1} parent=1 // pred_check
      _
    $region43: #{tpu_custom_call.1} parent=1 // pred_check_branch
      %97 = sbr.rel (0) target = $region45
    $region44: #{tpu_custom_call.1} parent=1 // pred_region
      %99 = dma.done [#allocation9], 16
    $region45: #{tpu_custom_call.1} parent=1 // pred_fallthru
      _
    // Predicated region
    $region46: #{tpu_custom_call.1} parent=1 // pred_check
      _
    $region47: #{tpu_custom_call.1} parent=1 // pred_check_branch
      %101 = sbr.rel (0) target = $region49
    $region48: #{tpu_custom_call.1} parent=1 // pred_region
      %103 = dma.done [#allocation9], 4096
    $region49: #{tpu_custom_call.1} parent=1 // pred_fallthru
      _
    %v104 = vld [vmem:[#allocation2] sm:$0xff]
    %v105 = vld [vmem:[#allocation5] sm:$0xff]
    %v106 = vld [vmem:[#allocation5 + $0x8] sm:$0xff]
    %v107 = vld [vmem:[#allocation5 + $0x10] sm:$0xff]
    %v108 = vld [vmem:[#allocation5 + $0x18] sm:$0xff]
    %v109 = vld [vmem:[#allocation5 + $0x20] sm:$0xff]
    %v110 = vld [vmem:[#allocation5 + $0x28] sm:$0xff]
    %v111 = vld [vmem:[#allocation5 + $0x30] sm:$0xff]
    %v112 = vld [vmem:[#allocation5 + $0x38] sm:$0xff]
    %v113 = vld [vmem:[#allocation5 + $0x40] sm:$0xff]
    %v114 = vld [vmem:[#allocation5 + $0x48] sm:$0xff]
    %v115 = vld [vmem:[#allocation5 + $0x50] sm:$0xff]
    %v116 = vld [vmem:[#allocation5 + $0x58] sm:$0xff]
    %v117 = vld [vmem:[#allocation5 + $0x60] sm:$0xff]
    %v118 = vld [vmem:[#allocation5 + $0x68] sm:$0xff]
    %v119 = vld [vmem:[#allocation5 + $0x70] sm:$0xff]
    %v120 = vld [vmem:[#allocation5 + $0x78] sm:$0xff]
    %v121 = vld [vmem:[%s2] sm:$0x1]
    %v123 = vperm.slane %v121, 0
    %125 = vmatpush.msra.mxu0 %v120
    %126 = vmatpush.msra.mxu0 %v119
    %127 = vmatpush.msra.mxu0 %v118
    %128 = vmatpush.msra.mxu0 %v117
    %129 = vmatpush.msra.mxu0 %v116
    %130 = vmatpush.msra.mxu0 %v115
    %131 = vmatpush.msra.mxu0 %v114
    %132 = vmatpush.msra.mxu0 %v113
    %133 = vmatpush.msra.mxu0 %v112
    %134 = vmatpush.msra.mxu0 %v111
    %135 = vmatpush.msra.mxu0 %v110
    %136 = vmatpush.msra.mxu0 %v109
    %137 = vmatpush.msra.mxu0 %v108
    %138 = vmatpush.msra.mxu0 %v107
    %139 = vmatpush.msra.mxu0 %v106
    %140 = vmatpush.msra.mxu0 %v105
    %141 = vmatmul.f32.gmra.mxu0 %v104
    %v142 = vpop.f32.mrf.mxu0
    %v143 = vadd.f32 %v123, %v142
    %144 = vdwg.mxu0
    %v145 = vxor.u32 %v143, 2147483648
    %v146 = vmul.f32 %v145, 1.442695
    %v147 = vpow.pop %v146
    %v148 = vadd.f32 %v147, 1.0
    %v149 = vrcp.pop %v148
    %v150 = vmul.f32 %v148, %v149
    %v151 = vsub.f32 1.0, %v150
    %v152 = vmul.f32 %v149, %v151
    %v153 = vadd.f32 %v149, %v152
    %vm154 = vweird.f32 %v148
    %vm155 = vweird.f32 %v149
    %vm156 = vmor %vm154, %vm155
    %v157 = vsel %vm156, %v149, %v153
    %v158 = vand.u32 2147483647, %v148
    %vm159 = vcmp.eq.f32.partialorder %v158, 8.507059e+37
    %v160 = vand.u32 %v148, 2147483648
    %v161 = vor.u32 1.1754944e-38, %v160
    %v162 = vsel %vm159, %v161, %v157
    %v163 = vmul.f32 1.0, %v162
    %v164 = vmul.f32 %v143, %v163
    %v165 = vld [vmem:[#allocation7] sm:$0xff]
    %v166 = vld [vmem:[#allocation7 + $0x8] sm:$0xff]
    %v167 = vld [vmem:[#allocation7 + $0x10] sm:$0xff]
    %v168 = vld [vmem:[#allocation7 + $0x18] sm:$0xff]
    %v169 = vld [vmem:[#allocation7 + $0x20] sm:$0xff]
    %v170 = vld [vmem:[#allocation7 + $0x28] sm:$0xff]
    %v171 = vld [vmem:[#allocation7 + $0x30] sm:$0xff]
    %v172 = vld [vmem:[#allocation7 + $0x38] sm:$0xff]
    %v173 = vld [vmem:[#allocation7 + $0x40] sm:$0xff]
    %v174 = vld [vmem:[#allocation7 + $0x48] sm:$0xff]
    %v175 = vld [vmem:[#allocation7 + $0x50] sm:$0xff]
    %v176 = vld [vmem:[#allocation7 + $0x58] sm:$0xff]
    %v177 = vld [vmem:[#allocation7 + $0x60] sm:$0xff]
    %v178 = vld [vmem:[#allocation7 + $0x68] sm:$0xff]
    %v179 = vld [vmem:[#allocation7 + $0x70] sm:$0xff]
    %v180 = vld [vmem:[#allocation7 + $0x78] sm:$0xff]
    %v181 = vld [vmem:[#allocation8] sm:$0x1]
    %v183 = vperm.slane %v181, 0
    %185 = vmatpush.msra.mxu0 %v180
    %186 = vmatpush.msra.mxu0 %v179
    %187 = vmatpush.msra.mxu0 %v178
    %188 = vmatpush.msra.mxu0 %v177
    %189 = vmatpush.msra.mxu0 %v176
    %190 = vmatpush.msra.mxu0 %v175
    %191 = vmatpush.msra.mxu0 %v174
    %192 = vmatpush.msra.mxu0 %v173
    %193 = vmatpush.msra.mxu0 %v172
    %194 = vmatpush.msra.mxu0 %v171
    %195 = vmatpush.msra.mxu0 %v170
    %196 = vmatpush.msra.mxu0 %v169
    %197 = vmatpush.msra.mxu0 %v168
    %198 = vmatpush.msra.mxu0 %v167
    %199 = vmatpush.msra.mxu0 %v166
    %200 = vmatpush.msra.mxu0 %v165
    %201 = vmatmul.f32.gmra.mxu0 %v164
    %v202 = vpop.f32.mrf.mxu0
    %v203 = vadd.f32 %v183, %v202
    %204 = vdwg.mxu0
    %v205 = vxor.u32 %v203, 2147483648
    %v206 = vmul.f32 %v205, 1.442695
    %v207 = vpow.pop %v206
    %v208 = vadd.f32 %v207, 1.0
    %v209 = vrcp.pop %v208
    %v210 = vmul.f32 %v208, %v209
    %v211 = vsub.f32 1.0, %v210
    %v212 = vmul.f32 %v209, %v211
    %v213 = vadd.f32 %v209, %v212
    %vm214 = vweird.f32 %v208
    %vm215 = vweird.f32 %v209
    %vm216 = vmor %vm214, %vm215
    %v217 = vsel %vm216, %v209, %v213
    %v218 = vand.u32 2147483647, %v208
    %vm219 = vcmp.eq.f32.partialorder %v218, 8.507059e+37
    %v220 = vand.u32 %v208, 2147483648
    %v221 = vor.u32 1.1754944e-38, %v220
    %v222 = vsel %vm219, %v221, %v217
    %v223 = vmul.f32 1.0, %v222
    %v224 = vmul.f32 %v203, %v223
    %v225 = vld [vmem:[#allocation10] sm:$0xff]
    %v226 = vld [vmem:[#allocation10 + $0x8] sm:$0xff]
    %v227 = vld [vmem:[#allocation10 + $0x10] sm:$0xff]
    %v228 = vld [vmem:[#allocation10 + $0x18] sm:$0xff]
    %v229 = vld [vmem:[#allocation10 + $0x20] sm:$0xff]
    %v230 = vld [vmem:[#allocation10 + $0x28] sm:$0xff]
    %v231 = vld [vmem:[#allocation10 + $0x30] sm:$0xff]
    %v232 = vld [vmem:[#allocation10 + $0x38] sm:$0xff]
    %v233 = vld [vmem:[#allocation10 + $0x40] sm:$0xff]
    %v234 = vld [vmem:[#allocation10 + $0x48] sm:$0xff]
    %v235 = vld [vmem:[#allocation10 + $0x50] sm:$0xff]
    %v236 = vld [vmem:[#allocation10 + $0x58] sm:$0xff]
    %v237 = vld [vmem:[#allocation10 + $0x60] sm:$0xff]
    %v238 = vld [vmem:[#allocation10 + $0x68] sm:$0xff]
    %v239 = vld [vmem:[#allocation10 + $0x70] sm:$0xff]
    %v240 = vld [vmem:[#allocation10 + $0x78] sm:$0xff]
    %v241 = vld [vmem:[#allocation10 + $0x80] sm:$0xff]
    %v242 = vld [vmem:[#allocation10 + $0x88] sm:$0xff]
    %v243 = vld [vmem:[#allocation10 + $0x90] sm:$0xff]
    %v244 = vld [vmem:[#allocation10 + $0x98] sm:$0xff]
    %v245 = vld [vmem:[#allocation10 + $0xa0] sm:$0xff]
    %v246 = vld [vmem:[#allocation10 + $0xa8] sm:$0xff]
    %v247 = vld [vmem:[#allocation10 + $0xb0] sm:$0xff]
    %v248 = vld [vmem:[#allocation10 + $0xb8] sm:$0xff]
    %v249 = vld [vmem:[#allocation10 + $0xc0] sm:$0xff]
    %v250 = vld [vmem:[#allocation10 + $0xc8] sm:$0xff]
    %v251 = vld [vmem:[#allocation10 + $0xd0] sm:$0xff]
    %v252 = vld [vmem:[#allocation10 + $0xd8] sm:$0xff]
    %v253 = vld [vmem:[#allocation10 + $0xe0] sm:$0xff]
    %v254 = vld [vmem:[#allocation10 + $0xe8] sm:$0xff]
    %v255 = vld [vmem:[#allocation10 + $0xf0] sm:$0xff]
    %v256 = vld [vmem:[#allocation10 + $0xf8] sm:$0xff]
    %v257 = vld [vmem:[%s6] sm:$0x3]
    %v259 = vperm.slane %v257, 0
    %v260 = vperm.slane %v257, 1
    %263 = vmatpush.msra.mxu0 %v255
    %264 = vmatpush.msra.mxu0 %v253
    %265 = vmatpush.msra.mxu0 %v251
    %266 = vmatpush.msra.mxu0 %v249
    %267 = vmatpush.msra.mxu0 %v247
    %268 = vmatpush.msra.mxu0 %v245
    %269 = vmatpush.msra.mxu0 %v243
    %270 = vmatpush.msra.mxu0 %v241
    %271 = vmatpush.msra.mxu0 %v239
    %272 = vmatpush.msra.mxu0 %v237
    %273 = vmatpush.msra.mxu0 %v235
    %274 = vmatpush.msra.mxu0 %v233
    %275 = vmatpush.msra.mxu0 %v231
    %276 = vmatpush.msra.mxu0 %v229
    %277 = vmatpush.msra.mxu0 %v227
    %278 = vmatpush.msra.mxu0 %v225
    %279 = vmatmul.f32.gmra.mxu0 %v224
    %v280 = vpop.f32.mrf.mxu0
    %v281 = vadd.f32 %v259, %v280
    %282 = vdwg.mxu0
    %283 = vmatpush.msra.mxu0 %v256
    %284 = vmatpush.msra.mxu0 %v254
    %285 = vmatpush.msra.mxu0 %v252
    %286 = vmatpush.msra.mxu0 %v250
    %287 = vmatpush.msra.mxu0 %v248
    %288 = vmatpush.msra.mxu0 %v246
    %289 = vmatpush.msra.mxu0 %v244
    %290 = vmatpush.msra.mxu0 %v242
    %291 = vmatpush.msra.mxu0 %v240
    %292 = vmatpush.msra.mxu0 %v238
    %293 = vmatpush.msra.mxu0 %v236
    %294 = vmatpush.msra.mxu0 %v234
    %295 = vmatpush.msra.mxu0 %v232
    %296 = vmatpush.msra.mxu0 %v230
    %297 = vmatpush.msra.mxu0 %v228
    %298 = vmatpush.msra.mxu0 %v226
    %299 = vmatmul.f32.gmra.mxu0 %v224
    %v300 = vpop.f32.mrf.mxu0
    %v301 = vadd.f32 %v260, %v300
    %302 = vdwg.mxu0
    %303 = vst [vmem:[#allocation11] sm:$0xff] %v281
    %v304 = vmax.f32 %v301, -20.0
    %v305 = vmin.f32 %v304, 2.0
    %v306 = vmul.f32 %v305, 1.442695
    %v307 = vpow.pop %v306
    %308 = vst [vmem:[#allocation12] sm:$0xff] %v307
    // Predicated region
    $region50: #{tpu_custom_call.1} parent=1 // pred_check
      _
    $region51: #{tpu_custom_call.1} parent=1 // pred_check_branch
      %310 = sbr.rel (0) target = $region53
    $region52: #{tpu_custom_call.1} parent=1 // pred_region
      %312 = vsyncadd [#allocation4], 0
      %s314 = sshll.u32 [#allocation11], 4
      %s315 = int_to_ptr.vmem [resolvable:$true] %s314
      %s316 = sshll.u32 %s7, 4
      %s317 = int_to_ptr.hbm [resolvable:$true] %s316
      %319 = dma.vmem_to_hbm [thread:$0]  %s315, 128, %s317, [#allocation4]
    $region53: #{tpu_custom_call.1} parent=1 // pred_fallthru
      _
    // Predicated region
    $region54: #{tpu_custom_call.1} parent=1 // pred_check
      _
    $region55: #{tpu_custom_call.1} parent=1 // pred_check_branch
      %321 = sbr.rel (0) target = $region57
    $region56: #{tpu_custom_call.1} parent=1 // pred_region
      %323 = vsyncadd [#allocation13], 0
      %s325 = sshll.u32 [#allocation12], 4
      %s326 = int_to_ptr.vmem [resolvable:$true] %s325
      %s327 = sshll.u32 %s8, 4
      %s328 = int_to_ptr.hbm [resolvable:$true] %s327
      %330 = dma.vmem_to_hbm [thread:$0]  %s326, 128, %s328, [#allocation13]
    $region57: #{tpu_custom_call.1} parent=1 // pred_fallthru
      _
    // Predicated region
    $region58: #{tpu_custom_call.1} parent=1 // pred_check
      _
    $region59: #{tpu_custom_call.1} parent=1 // pred_check_branch
      %332 = sbr.rel (0) target = $region61
    $region60: #{tpu_custom_call.1} parent=1 // pred_region
      %334 = dma.done [#allocation4], 128
    $region61: #{tpu_custom_call.1} parent=1 // pred_fallthru
      _
    // Predicated region
    $region62: #{tpu_custom_call.1} parent=1 // pred_check
      _
    $region63: #{tpu_custom_call.1} parent=1 // pred_check_branch
      %336 = sbr.rel (0) target = $region65
    $region64: #{tpu_custom_call.1} parent=1 // pred_region
      %338 = dma.done [#allocation13], 128
    $region65: #{tpu_custom_call.1} parent=1 // pred_fallthru
      _
    %339 = vsyncpa [#allocation3], 1
    %340 = vsyncpa [#allocation6], 1
    %341 = vsyncpa [#allocation9], 1
    %342 = vsyncpa [#allocation4], 1
    %343 = vsyncpa [#allocation13], 1

</llo_original>
